<compile_context>
chip_gen: v6e
topology: v6e:2x2x1
jax: 0.10.0
libtpu: 0.0.40
codegen_flags: <defaults>
</compile_context>

<pallas_src>
import functools

import jax
import jax.numpy as jnp
from jax import lax
from jax.experimental import pallas as pl
from jax.experimental.pallas import tpu as pltpu


def _round_up(x, m):
    return ((x + m - 1) // m) * m


# ---------------------------------------------------------------------------
# Kernel 1: cv1 = 1x1 conv (as matmul, BN scale pre-folded) + bias + SiLU
# ---------------------------------------------------------------------------
def _conv1x1_bn_silu_kernel(x_ref, w_ref, b_ref, o_ref):
    # bf16 x bf16 -> f32 accumulation on the MXU; epilogue stays in f32.
    y = jnp.dot(x_ref[...], w_ref[...], preferred_element_type=jnp.float32)
    y = y + b_ref[...]                                   # folded-BN bias (f32)
    o_ref[...] = (y * jax.nn.sigmoid(y)).astype(o_ref.dtype)   # SiLU


def _pick_tm(M, target=512):
    """Row tile: prefer an exact divisor of M (no pad copy) giving >= 2 grid
    steps (v7x has 2 TensorCores); fall back to a single tile / padded tiling."""
    if M >= 16:
        upper = min(target, M // 2)
        upper -= upper % 8
        for cand in range(upper, 7, -8):
            if M % cand == 0:
                return cand, M                 # exact tiling, >= 2 steps
    if M <= target:
        return M, M                            # single step, no pad
    return target, _round_up(M, target)        # rare ragged fallback (pads)


def conv1x1_bn_silu(x2d, w, bias, *, out_dtype=jnp.bfloat16, tile_m=512):
    """x2d: (M, Cin) bf16; w: (Cin, Cout) bf16 (BN scale folded); bias: (1, Cout) f32."""
    M, cin = x2d.shape
    cout = w.shape[1]
    tm, Mp = _pick_tm(M, tile_m)
    xp = x2d if Mp == M else jnp.pad(x2d, ((0, Mp - M), (0, 0)))

    out = pl.pallas_call(
        _conv1x1_bn_silu_kernel,
        out_shape=jax.ShapeDtypeStruct((Mp, cout), out_dtype),
        grid=(Mp // tm,),
        in_specs=[
            pl.BlockSpec((tm, cin), lambda i: (i, 0)),
            pl.BlockSpec((cin, cout), lambda i: (0, 0)),
            pl.BlockSpec((1, cout), lambda i: (0, 0)),
        ],
        out_specs=pl.BlockSpec((tm, cout), lambda i: (i, 0)),
        compiler_params=pltpu.CompilerParams(
            dimension_semantics=("parallel",),
            vmem_limit_bytes=64 * 1024 * 1024),
    )(xp, w, bias)
    return out if Mp == M else out[:M]


# ---------------------------------------------------------------------------
# Kernel 2: fused [maxpool5 x3 + concat + cv2 (1x1 conv + BN + SiLU)]
# ---------------------------------------------------------------------------
def _sep_max_pool(src, R, S, K):
    """Separable KxK / stride-1 max over an (R, S, C) ref/value whose borders
    are already framed; returns the (R-2p, S-2p, C) value of full windows."""
    p = K // 2
    Sout, Rout = S - 2 * p, R - 2 * p
    m = src[:, 0:Sout, :]
    for d in range(1, K):                       # K maxes along W (sublane dim)
        m = jnp.maximum(m, src[:, d:d + Sout, :])
    out = m[0:Rout, :, :]
    for d in range(1, K):                       # K maxes along H (major dim)
        out = jnp.maximum(out, m[d:d + Rout, :, :])
    return out


def _pool3_cv2_kernel(x_ref, w2_ref, b2_ref, o_ref, pad_ref, *,
                      K, TH, nJ, halo, wpad):
    # x_ref  : (1, H, W, C)    bf16  full image, resident across the row tiles
    # w2_ref : (4*C, c2)       bf16  cv2 weight (BN scale folded in)
    # b2_ref : (1, c2)         f32   cv2 folded-BN bias
    # o_ref  : (1, TH, W, c2)  bf16  output row tile
    # pad_ref: (TH+2*halo, W+2*wpad, C) bf16 scratch, framed with -inf
    p = K // 2
    _, H, W, C = x_ref.shape
    c2 = o_ref.shape[-1]
    THE = TH + 2 * halo
    SW = W + 2 * wpad
    j = pl.program_id(1)
    r0 = pl.multiple_of(j * TH, TH)

    def neg_fill(shape):
        return jnp.full(shape, -jnp.inf, pad_ref.dtype)

    # -inf W-border columns: filled once per image; data never overwrites them.
    @pl.when(j == 0)
    def _():
        pad_ref[:, 0:wpad, :] = neg_fill((THE, wpad, C))
        pad_ref[:, wpad + W:, :] = neg_fill((THE, wpad, C))

    # Top halo rows: real rows for interior tiles, -inf at the image top.
    @pl.when(j > 0)
    def _():
        pad_ref[0:halo, wpad:wpad + W, :] = x_ref[0, pl.ds(r0 - halo, halo), :, :]

    @pl.when(j == 0)
    def _():
        pad_ref[0:halo, :, :] = neg_fill((halo, SW, C))

    # Centre rows (always valid); sublane-aligned store (wpad is a multiple of 8).
    xt = x_ref[0, pl.ds(r0, TH), :, :]                     # (TH, W, C) bf16
    pad_ref[halo:halo + TH, wpad:wpad + W, :] = xt

    # Bottom halo rows.
    @pl.when(j < nJ - 1)
    def _():
        pad_ref[halo + TH:, wpad:wpad + W, :] = x_ref[0, pl.ds(r0 + TH, halo), :, :]

    @pl.when(j == nJ - 1)
    def _():
        pad_ref[halo + TH:, :, :] = neg_fill((halo, SW, C))

    # Three chained separable "same" 5x5 max-pools with shrinking extents.
    # No intermediate stores / re-padding are needed (see header note).
    y1 = _sep_max_pool(pad_ref, THE, SW, K)
    y2 = _sep_max_pool(y1, THE - 2 * p, SW - 2 * p, K)
    y3 = _sep_max_pool(y2, THE - 4 * p, SW - 4 * p, K)

    # Slice every branch at the output tile's image coordinates and run cv2 as
    # four accumulated MXU matmuls (== one matmul against concat([x,y1,y2,y3])).
    M2 = TH * W
    x_t = xt.reshape(M2, C)
    y1_t = y1[2 * p:2 * p + TH, wpad - p:wpad - p + W, :].reshape(M2, C)
    y2_t = y2[p:p + TH, wpad - 2 * p:wpad - 2 * p + W, :].reshape(M2, C)
    y3_t = y3[0:TH, wpad - 3 * p:wpad - 3 * p + W, :].reshape(M2, C)

    acc = jnp.dot(x_t, w2_ref[0:C, :], preferred_element_type=jnp.float32)
    acc = acc + jnp.dot(y1_t, w2_ref[C:2 * C, :], preferred_element_type=jnp.float32)
    acc = acc + jnp.dot(y2_t, w2_ref[2 * C:3 * C, :], preferred_element_type=jnp.float32)
    acc = acc + jnp.dot(y3_t, w2_ref[3 * C:4 * C, :], preferred_element_type=jnp.float32)
    acc = acc + b2_ref[...]
    out = acc * jax.nn.sigmoid(acc)                        # SiLU epilogue in f32
    o_ref[...] = out.reshape(1, TH, W, c2).astype(o_ref.dtype)


def _pick_row_tile(H, halo, target=8):
    """Divisor of H that is >= halo (so each tile's halo is either fully inside a
    neighbouring tile or fully outside the image); fall back to the whole image."""
    cands = [d for d in range(halo, H) if H % d == 0]
    if not cands:
        return H
    return min(cands, key=lambda d: (abs(d - target), -d))


def fused_pool3_cv2(x_nhwc, w2, b2, *, K=5, out_dtype=jnp.bfloat16):
    """x_nhwc: (N,H,W,C) bf16 -> (N,H,W,c2) = SiLU(BN(concat([x,p,p2,p3]) @ w2))."""
    N, H, W, C = x_nhwc.shape
    c2 = w2.shape[1]
    p = K // 2
    halo = 3 * p                       # three chained pools -> 6-row halo
    wpad = _round_up(halo, 8)          # 8-aligned interior store along W
    TH = _pick_row_tile(H, halo)
    nJ = H // TH

    kern = functools.partial(_pool3_cv2_kernel, K=K, TH=TH, nJ=nJ,
                             halo=halo, wpad=wpad)
    return pl.pallas_call(
        kern,
        out_shape=jax.ShapeDtypeStruct((N, H, W, c2), out_dtype),
        grid=(N, nJ),
        in_specs=[
            pl.BlockSpec((1, H, W, C), lambda n, j: (n, 0, 0, 0)),   # resident per n
            pl.BlockSpec((4 * C, c2), lambda n, j: (0, 0)),
            pl.BlockSpec((1, c2), lambda n, j: (0, 0)),
        ],
        out_specs=pl.BlockSpec((1, TH, W, c2), lambda n, j: (n, j, 0, 0)),
        scratch_shapes=[pltpu.VMEM((TH + 2 * halo, W + 2 * wpad, C), x_nhwc.dtype)],
        compiler_params=pltpu.CompilerParams(
            dimension_semantics=("parallel", "arbitrary"),
            vmem_limit_bytes=64 * 1024 * 1024),
    )(x_nhwc, w2, b2)


# ---------------------------------------------------------------------------
# SPFF parameters (deterministic synthetic init) and forward
# ---------------------------------------------------------------------------
def init_spff_params(key, c1, c2):
    c_mid = c2 // 2
    ks = jax.random.split(key, 10)

    def bn_fold(kg, kb, km, kv, c):
        gamma = jax.random.uniform(kg, (c,), minval=0.5, maxval=1.5)
        beta = 0.1 * jax.random.normal(kb, (c,))
        mean = 0.1 * jax.random.normal(km, (c,))
        var = jax.random.uniform(kv, (c,), minval=0.5, maxval=1.5)
        scale = gamma / jnp.sqrt(var + 1e-3)             # eps = 0.001 (BatchNorm2d)
        bias = beta - mean * scale
        return (scale.reshape(1, c).astype(jnp.float32),
                bias.reshape(1, c).astype(jnp.float32))

    # Conv2d weights (c_out, c_in, 1, 1) stored directly as (c_in, c_out) matmul weights.
    w1 = (0.3 * jax.random.normal(ks[0], (c1, c_mid))).astype(jnp.float32)
    s1, b1 = bn_fold(ks[1], ks[2], ks[3], ks[4], c_mid)
    w2 = (0.3 * jax.random.normal(ks[5], (4 * c_mid, c2))).astype(jnp.float32)
    s2, b2 = bn_fold(ks[6], ks[7], ks[8], ks[9], c2)
    return dict(w1=w1, s1=s1, b1=b1, w2=w2, s2=s2, b2=b2, c_mid=c_mid, c2=c2)


def spff_forward(x_nchw, p):
    N, C1, H, W = x_nchw.shape
    c_mid, c2 = p["c_mid"], p["c2"]

    # Fold BN scale into the weights; bf16 matmul operands, f32 bias/epilogue.
    w1 = (p["w1"] * p["s1"]).astype(jnp.bfloat16)
    w2 = (p["w2"] * p["s2"]).astype(jnp.bfloat16)

    # Single entry transpose to NHWC.
    x_nhwc = jnp.transpose(x_nchw, (0, 2, 3, 1))

    # cv1: 1x1 conv + BN + SiLU (bf16 activations out -> half the pool bytes).
    x2d = x_nhwc.reshape(N * H * W, C1).astype(jnp.bfloat16)
    x_mid = conv1x1_bn_silu(x2d, w1, p["b1"], out_dtype=jnp.bfloat16)
    x_mid = x_mid.reshape(N, H, W, c_mid)

    # Fused 5x5 maxpool x3 + concat + cv2; the 4C concat slab never hits HBM.
    z = fused_pool3_cv2(x_mid, w2, p["b2"], K=5, out_dtype=jnp.bfloat16)

    # Single exit transpose back to NCHW (on bf16), then upcast.
    return jnp.transpose(z, (0, 3, 1, 2)).astype(jnp.float32)


# ---------------------------------------------------------------------------
# Pure-JAX f32 reference (correctness check)
# ---------------------------------------------------------------------------
def spff_reference(x_nchw, p):
    def conv_bn_silu(x, w, s, b):
        y = jnp.einsum("nchw,cd->ndhw", x, w, precision=lax.Precision.HIGHEST)
        y = y * s.reshape(1, -1, 1, 1) + b.reshape(1, -1, 1, 1)
        return y * jax.nn.sigmoid(y)

    def mp(x):
        return lax.reduce_window(
            x, -jnp.inf, lax.max,
            (1, 1, 5, 5), (1, 1, 1, 1),
            [(0, 0), (0, 0), (2, 2), (2, 2)],
        )

    xm = conv_bn_silu(x_nchw, p["w1"], p["s1"], p["b1"])
    y1 = mp(xm)
    y2 = mp(y1)
    y3 = mp(y2)
    cat = jnp.concatenate([xm, y1, y2, y3], axis=1)
    return conv_bn_silu(cat, p["w2"], p["s2"], p["b2"])


if __name__ == "__main__":
    key = jax.random.PRNGKey(0)
    k_x, k_p = jax.random.split(key)

    N, c1, c2, H, W = 2, 4, 8, 16, 16
    x = jax.random.normal(k_x, (N, c1, H, W), dtype=jnp.float32)
    params = init_spff_params(k_p, c1, c2)

    out = jax.block_until_ready(spff_forward(x, params))
    ref = jax.block_until_ready(spff_reference(x, params))

    assert out.shape == (N, c2, H, W)
    assert out.dtype == jnp.float32
    # bf16 MXU operands / bf16 intermediate activations -> mixed-precision tolerance.
    assert bool(jnp.allclose(out, ref, rtol=5e-2, atol=5e-2))

    print("KERNEL_OK")
</pallas_src>

<mosaic_0001>
module attributes {stable_mosaic.version = 11 : i64} {
  func.func @_conv1x1_bn_silu_kernel(%arg0: i32, %arg1: memref<256x4xbf16, #tpu.memory_space<vmem>>, %arg2: memref<4x4xbf16, #tpu.memory_space<vmem>>, %arg3: memref<1x4xf32, #tpu.memory_space<vmem>>, %arg4: memref<256x4xbf16, #tpu.memory_space<vmem>>) attributes {dimension_semantics = [#tpu.dimension_semantics<parallel>], iteration_bounds = array<i64: 2>, scalar_prefetch = 0 : i64, scratch_operands = 0 : i64, tpu.core_type = #tpu.core_type<tc>, window_params = [{transform_indices = @transform_0, window_bounds = array<i64: 256, 4>}, {pipeline_mode = #tpu.pipeline_mode<synchronous>, transform_indices = @transform_1, window_bounds = array<i64: 4, 4>}, {pipeline_mode = #tpu.pipeline_mode<synchronous>, transform_indices = @transform_2, window_bounds = array<i64: 1, 4>}, {transform_indices = @transform_3, window_bounds = array<i64: 256, 4>}]} {
    %c0 = arith.constant 0 : index
    %c0_0 = arith.constant 0 : index
    %0 = vector.load %arg1[%c0, %c0_0] : memref<256x4xbf16, #tpu.memory_space<vmem>>, vector<256x4xbf16>
    %c0_1 = arith.constant 0 : index
    %c0_2 = arith.constant 0 : index
    %1 = vector.load %arg2[%c0_1, %c0_2] : memref<4x4xbf16, #tpu.memory_space<vmem>>, vector<4x4xbf16>
    %cst = arith.constant dense<0.000000e+00> : vector<256x4xf32>
    %2 = tpu.matmul %0, %1, %cst {dimension_numbers = #tpu.dot_dimension_numbers<[1], [0], [0], [1], [0, 0, 1, 1], [], []>} : vector<256x4xbf16>, vector<4x4xbf16>, vector<256x4xf32> -> vector<256x4xf32>
    %c0_3 = arith.constant 0 : index
    %c0_4 = arith.constant 0 : index
    %3 = vector.load %arg3[%c0_3, %c0_4] : memref<1x4xf32, #tpu.memory_space<vmem>>, vector<1x4xf32>
    %4 = vector.broadcast %3 : vector<1x4xf32> to vector<256x4xf32>
    %5 = arith.addf %2, %4 : vector<256x4xf32>
    %6 = arith.negf %5 : vector<256x4xf32>
    %7 = math.exp %6 : vector<256x4xf32>
    %cst_5 = arith.constant 1.000000e+00 : f32
    %8 = vector.broadcast %cst_5 : f32 to vector<256x4xf32>
    %9 = arith.addf %8, %7 : vector<256x4xf32>
    %10 = arith.divf %8, %9 : vector<256x4xf32>
    %11 = arith.mulf %5, %10 : vector<256x4xf32>
    %12 = arith.truncf %11 : vector<256x4xf32> to vector<256x4xbf16>
    %c0_6 = arith.constant 0 : index
    %c0_7 = arith.constant 0 : index
    %13 = vector.load %arg4[%c0_6, %c0_7] : memref<256x4xbf16, #tpu.memory_space<vmem>>, vector<256x4xbf16>
    tpu.vector_store %arg4[%c0_6, %c0_7], %12 {strides = array<i32>} : memref<256x4xbf16, #tpu.memory_space<vmem>>, vector<256x4xbf16>,
    return
  }
  func.func @transform_0(%arg0: i32) -> (i32, i32) {
    %c0_i32 = arith.constant 0 : i32
    %c0_i32_0 = arith.constant 0 : i32
    return %arg0, %c0_i32 : i32, i32
  }
  func.func @transform_1(%arg0: i32) -> (i32, i32) {
    %c0_i32 = arith.constant 0 : i32
    %c0_i32_0 = arith.constant 0 : i32
    %c0_i32_1 = arith.constant 0 : i32
    return %c0_i32, %c0_i32_0 : i32, i32
  }
  func.func @transform_2(%arg0: i32) -> (i32, i32) {
    %c0_i32 = arith.constant 0 : i32
    %c0_i32_0 = arith.constant 0 : i32
    %c0_i32_1 = arith.constant 0 : i32
    return %c0_i32, %c0_i32_0 : i32, i32
  }
  func.func @transform_3(%arg0: i32) -> (i32, i32) {
    %c0_i32 = arith.constant 0 : i32
    %c0_i32_0 = arith.constant 0 : i32
    return %arg0, %c0_i32 : i32, i32
  }
}

</mosaic_0001>

<llo_original>
// kernel: tpu_custom_call.1
$region0: #{tpu_custom_call.1}
  #allocation0 [shape = 'u32[]', space=smem, size = 0x4, offset = 0x4, fixed_abs, tag = 'smem constant byte address 0x4 - core index']
  #allocation1 [shape = 'u32[144,128]{1,0:T(1,128)}', space=vmem, size = 0x12000, scoped, tag = 'internal scratch']
  %s0 = inlined_call_operand.vmem [shape: bf16[512,4], index: 0, kind: input, shape index: {}]
  %s1 = inlined_call_operand.vmem [shape: bf16[4,4], index: 1, kind: input, shape index: {}]
  %s2 = inlined_call_operand.vmem [shape: f32[1,4], index: 2, kind: input, shape index: {}]
  %s3 = inlined_call_operand.vmem [shape: bf16[512,4], index: 3, kind: output, shape index: {}]
  %s4 = sld [smem:[#allocation0]]
  $region45: #{tpu_custom_call.1} parent=0
    _
  %s6 = ssub.s32 1, %s4
  %s7 = scalar_select 0, %s6, %s4
  loop: start=0, step=1, limit=4
  $region2: #{tpu_custom_call.1} parent=0 // loop_pre_header
    _
  $region3: #{tpu_custom_call.1} parent=0 // loop_header
    %s9 = sphi 0, %s13
    %p10 = scmp.ge.s32.totalorder %s9, 4
    %s19 = sphi 0, %s21
    %s22 = sphi 0, %s19
    %s23 = sphi 0, %s22
    %s39 = sphi 0, %s23
    %s43 = sphi 0, %s43
    %s45 = sphi 0, %s43
    %s46 = sphi 0, %s45
    %s60 = sphi 0, %s46
    %s64 = sphi 0, %s64
    %s66 = sphi 0, %s64
    %s67 = sphi 0, %s66
    %s81 = sphi 0, %s67
    %s87 = sphi 0, %s89
    %s90 = sphi 0, %s87
    %s91 = sphi 0, %s90
    %s107 = sphi 0, %s91
  $region4: #{tpu_custom_call.1} parent=0 // loop_header_branch
    %12 = sbr.rel (%p10) target = $region8
  $region5: #{tpu_custom_call.1} parent=0 // loop_body
    %s14 = ssub.s32 %s9, 1
    %s15 = ssub.s32 %s9, 2
    %s16 = sadd.s32 %s9, 1
    %s17 = ssub.s32 %s9, %s16
    %p18 = scmp.eq.s32.totalorder %s17, 0
    %s20 = sadd.s32 %s19, 1
    %s21 = scalar_select %p18, %s19, %s20
    %p24 = pneg %p18
    %p25 = scmp.eq.s32.totalorder %s9, 1
    %p26 = por %p24, %p25
    %p27 = scmp.ne.s32.totalorder %s19, %s22
    %p28 = scmp.eq.s32.totalorder %s9, 0
    %p29 = por %p27, %p28
    %p30 = scmp.ne.s32.totalorder %s19, %s22
    %p31 = scmp.eq.s32.totalorder %s14, 1
    %p32 = por %p30, %p31
    %p33 = scmp.ne.s32.totalorder %s22, %s23
    %p34 = scmp.eq.s32.totalorder %s14, 0
    %p35 = por %p33, %p34
    %p36 = scmp.ne.s32.totalorder %s22, %s23
    %p37 = scmp.eq.s32.totalorder %s15, 1
    %p38 = por %p36, %p37
    %p40 = scmp.ne.s32.totalorder %s23, %s39
    %p41 = scmp.eq.s32.totalorder %s15, 0
    %p42 = por %p40, %p41
    %s44 = sadd.s32 %s43, 1
    %p47 = scmp.eq.s32.totalorder %s9, 1
    %p48 = scmp.ne.s32.totalorder %s43, %s45
    %p49 = scmp.eq.s32.totalorder %s9, 0
    %p50 = por %p48, %p49
    %p51 = scmp.ne.s32.totalorder %s43, %s45
    %p52 = scmp.eq.s32.totalorder %s14, 1
    %p53 = por %p51, %p52
    %p54 = scmp.ne.s32.totalorder %s45, %s46
    %p55 = scmp.eq.s32.totalorder %s14, 0
    %p56 = por %p54, %p55
    %p57 = scmp.ne.s32.totalorder %s45, %s46
    %p58 = scmp.eq.s32.totalorder %s15, 1
    %p59 = por %p57, %p58
    %p61 = scmp.ne.s32.totalorder %s46, %s60
    %p62 = scmp.eq.s32.totalorder %s15, 0
    %p63 = por %p61, %p62
    %s65 = sadd.s32 %s64, 1
    %p68 = scmp.eq.s32.totalorder %s9, 1
    %p69 = scmp.ne.s32.totalorder %s64, %s66
    %p70 = scmp.eq.s32.totalorder %s9, 0
    %p71 = por %p69, %p70
    %p72 = scmp.ne.s32.totalorder %s64, %s66
    %p73 = scmp.eq.s32.totalorder %s14, 1
    %p74 = por %p72, %p73
    %p75 = scmp.ne.s32.totalorder %s66, %s67
    %p76 = scmp.eq.s32.totalorder %s14, 0
    %p77 = por %p75, %p76
    %p78 = scmp.ne.s32.totalorder %s66, %s67
    %p79 = scmp.eq.s32.totalorder %s15, 1
    %p80 = por %p78, %p79
    %p82 = scmp.ne.s32.totalorder %s67, %s81
    %p83 = scmp.eq.s32.totalorder %s15, 0
    %p84 = por %p82, %p83
    %s85 = ssub.s32 %s9, %s16
    %p86 = scmp.eq.s32.totalorder %s85, 0
    %s88 = sadd.s32 %s87, 1
    %s89 = scalar_select %p86, %s87, %s88
    %p92 = pneg %p86
    %p93 = scmp.eq.s32.totalorder %s9, 1
    %p94 = por %p92, %p93
    %p95 = scmp.ne.s32.totalorder %s87, %s90
    %p96 = scmp.eq.s32.totalorder %s9, 0
    %p97 = por %p95, %p96
    %p98 = scmp.ne.s32.totalorder %s87, %s90
    %p99 = scmp.eq.s32.totalorder %s14, 1
    %p100 = por %p98, %p99
    %p101 = scmp.ne.s32.totalorder %s90, %s91
    %p102 = scmp.eq.s32.totalorder %s14, 0
    %p103 = por %p101, %p102
    %p104 = scmp.ne.s32.totalorder %s90, %s91
    %p105 = scmp.eq.s32.totalorder %s15, 1
    %p106 = por %p104, %p105
    %p108 = scmp.ne.s32.totalorder %s91, %s107
    %p109 = scmp.eq.s32.totalorder %s15, 0
    %p110 = por %p108, %p109
    %p111 = scmp.le.s32.totalorder 1, %s9
    %p112 = scmp.lt.s32.totalorder %s9, 3
    %p113 = pnand %p111, %p112
    %p114 = pneg %p113
    // Predicated region
    $region9: #{tpu_custom_call.1} parent=5 // pred_check
      _
    $region10: #{tpu_custom_call.1} parent=5 // pred_check_branch
      %116 = sbr.rel (%p113) target = $region12
    $region11: #{tpu_custom_call.1} parent=5 // pred_region
      %s117 = ssub.s32 %s9, 1
      // Predicated region
      $region13: #{tpu_custom_call.1} parent=11 // pred_check
        %p118 = pneg %p56
      $region14: #{tpu_custom_call.1} parent=11 // pred_check_branch
        %120 = sbr.rel (%p118) target = $region16
      $region15: #{tpu_custom_call.1} parent=11 // pred_region
        _
      $region16: #{tpu_custom_call.1} parent=11 // pred_fallthru
        _
      // Predicated region
      $region17: #{tpu_custom_call.1} parent=11 // pred_check
        %p121 = pneg %p77
      $region18: #{tpu_custom_call.1} parent=11 // pred_check_branch
        %123 = sbr.rel (%p121) target = $region20
      $region19: #{tpu_custom_call.1} parent=11 // pred_region
        _
      $region20: #{tpu_custom_call.1} parent=11 // pred_fallthru
        _
    $region12: #{tpu_custom_call.1} parent=5 // pred_fallthru
      _
    %p124 = scmp.lt.s32.totalorder %s9, 2
    // Predicated region
    $region21: #{tpu_custom_call.1} parent=5 // pred_check
      %p125 = pneg %p124
    $region22: #{tpu_custom_call.1} parent=5 // pred_check_branch
      %127 = sbr.rel (%p125) target = $region24
    $region23: #{tpu_custom_call.1} parent=5 // pred_region
      // Predicated region
      $region25: #{tpu_custom_call.1} parent=23 // pred_check
        %p128 = pneg %p29
      $region26: #{tpu_custom_call.1} parent=23 // pred_check_branch
        %130 = sbr.rel (%p128) target = $region28
      $region27: #{tpu_custom_call.1} parent=23 // pred_region
        %s131 = smul.u32 32, %s9
        %p132 = scmp.lt.s32.totalorder %s131, 63
        %s133 = scalar_select %p132, %s131, 63
        %s134 = smul.addr %s133, 4
        %s135 = scalar_lea.vmem %s0, %s134
        %s136 = smul.u32 32, %s9
      $region28: #{tpu_custom_call.1} parent=23 // pred_fallthru
        _
    $region24: #{tpu_custom_call.1} parent=5 // pred_fallthru
      _
    %p137 = scmp.le.s32.totalorder 1, %s9
    %p138 = scmp.lt.s32.totalorder %s9, 3
    %p139 = pnand %p137, %p138
    %p140 = pneg %p139
    // Predicated region
    $region29: #{tpu_custom_call.1} parent=5 // pred_check
      _
    $region30: #{tpu_custom_call.1} parent=5 // pred_check_branch
      %142 = sbr.rel (%p139) target = $region32
    $region31: #{tpu_custom_call.1} parent=5 // pred_region
      %s143 = ssub.s32 %s9, 1
      %s144 = smul.u32 32, %s14
      %p145 = scmp.lt.s32.totalorder %s144, 63
      %s146 = scalar_select %p145, %s144, 63
      %s147 = smul.addr %s146, 4
      %s148 = scalar_lea.vmem %s0, %s147
      %p149 = pneg %p35
      %p150 = pneg %p32
      %p151 = pneg %p56
      %p152 = pneg %p53
      %p153 = pneg %p77
      %p154 = pneg %p74
      %p155 = pneg %p103
      %p156 = pneg %p100
      %s157 = smul.u32 32, %s14
      %p158 = scmp.lt.s32.totalorder %s157, 63
      %s159 = scalar_select %p158, %s157, 63
      %s160 = smul.addr %s159, 4
      %s161 = scalar_lea.vmem %s3, %s160
      %s162 = smul.u32 32, %s14
      %p163 = scmp.lt.s32.totalorder %s162, 63
      %s164 = scalar_select %p163, %s162, 63
      %s165 = smul.addr %s164, 4
      %s166 = scalar_lea.vmem %s0, %s165
      %s167 = smul.u32 32, %s14
      %s168 = smul.u32 32, %s14
      %p169 = scmp.lt.s32.totalorder %s168, 63
      %s170 = scalar_select %p169, %s168, 63
      %s171 = smul.addr %s170, 4
      %s172 = scalar_lea.vmem %s3, %s171
      %s173 = smul.u32 32, %s14
      %v175 = vld [vmem:[%s166] sm:$0xf]
      %v176 = vld [vmem:[%s166 + $0x4] sm:$0xf]
      %v177 = vld [vmem:[%s166 + $0x8] sm:$0xf]
      %v178 = vld [vmem:[%s166 + $0xc] sm:$0xf]
      %v179 = vld [vmem:[%s166 + $0x10] sm:$0xf]
      %v180 = vld [vmem:[%s166 + $0x14] sm:$0xf]
      %v181 = vld [vmem:[%s166 + $0x18] sm:$0xf]
      %v182 = vld [vmem:[%s166 + $0x1c] sm:$0xf]
      %v183 = vld [vmem:[%s166 + $0x20] sm:$0xf]
      %v184 = vld [vmem:[%s166 + $0x24] sm:$0xf]
      %v185 = vld [vmem:[%s166 + $0x28] sm:$0xf]
      %v186 = vld [vmem:[%s166 + $0x2c] sm:$0xf]
      %v187 = vld [vmem:[%s166 + $0x30] sm:$0xf]
      %v188 = vld [vmem:[%s166 + $0x34] sm:$0xf]
      %v189 = vld [vmem:[%s166 + $0x38] sm:$0xf]
      %v190 = vld [vmem:[%s166 + $0x3c] sm:$0xf]
      %v191 = vld [vmem:[%s166 + $0x40] sm:$0xf]
      %v192 = vld [vmem:[%s166 + $0x44] sm:$0xf]
      %v193 = vld [vmem:[%s166 + $0x48] sm:$0xf]
      %v194 = vld [vmem:[%s166 + $0x4c] sm:$0xf]
      %v195 = vld [vmem:[%s166 + $0x50] sm:$0xf]
      %v196 = vld [vmem:[%s166 + $0x54] sm:$0xf]
      %v197 = vld [vmem:[%s166 + $0x58] sm:$0xf]
      %v198 = vld [vmem:[%s166 + $0x5c] sm:$0xf]
      %v199 = vld [vmem:[%s166 + $0x60] sm:$0xf]
      %v200 = vld [vmem:[%s166 + $0x64] sm:$0xf]
      %v201 = vld [vmem:[%s166 + $0x68] sm:$0xf]
      %v202 = vld [vmem:[%s166 + $0x6c] sm:$0xf]
      %v203 = vld [vmem:[%s166 + $0x70] sm:$0xf]
      %v204 = vld [vmem:[%s166 + $0x74] sm:$0xf]
      %v205 = vld [vmem:[%s166 + $0x78] sm:$0xf]
      %v206 = vld [vmem:[%s166 + $0x7c] sm:$0xf]
      %v207 = vld [vmem:[%s1] sm:$0x3]
      %v208 = vld [vmem:[%s2] sm:$0x1]
      %v210 = vlaneseq
      %v211 = vshrl.u32 %v210, 7
      %v212 = vsub.s32 0, %v211
      %v213 = vrot.slane %v208, %v212
      %v247 = vunpack.c.l.b16 %v175
      %v248 = vunpack.c.l.b16 %v176
      %v249 = vunpack.c.l.b16 %v177
      %v250 = vunpack.c.l.b16 %v178
      %v251 = vunpack.c.l.b16 %v179
      %v252 = vunpack.c.l.b16 %v180
      %v253 = vunpack.c.l.b16 %v181
      %v254 = vunpack.c.l.b16 %v182
      %v255 = vunpack.c.l.b16 %v183
      %v256 = vunpack.c.l.b16 %v184
      %v257 = vunpack.c.l.b16 %v185
      %v258 = vunpack.c.l.b16 %v186
      %v259 = vunpack.c.l.b16 %v187
      %v260 = vunpack.c.l.b16 %v188
      %v261 = vunpack.c.l.b16 %v189
      %v262 = vunpack.c.l.b16 %v190
      %v263 = vunpack.c.l.b16 %v191
      %v264 = vunpack.c.l.b16 %v192
      %v265 = vunpack.c.l.b16 %v193
      %v266 = vunpack.c.l.b16 %v194
      %v267 = vunpack.c.l.b16 %v195
      %v268 = vunpack.c.l.b16 %v196
      %v269 = vunpack.c.l.b16 %v197
      %v270 = vunpack.c.l.b16 %v198
      %v271 = vunpack.c.l.b16 %v199
      %v272 = vunpack.c.l.b16 %v200
      %v273 = vunpack.c.l.b16 %v201
      %v274 = vunpack.c.l.b16 %v202
      %v275 = vunpack.c.l.b16 %v203
      %v276 = vunpack.c.l.b16 %v204
      %v277 = vunpack.c.l.b16 %v205
      %v278 = vunpack.c.l.b16 %v206
      %v279 = vpack.c.b16 %v248, %v247
      %v280 = vpack.c.b16 %v250, %v249
      %v281 = vpack.c.b16 %v252, %v251
      %v282 = vpack.c.b16 %v254, %v253
      %v283 = vpack.c.b16 %v256, %v255
      %v284 = vpack.c.b16 %v258, %v257
      %v285 = vpack.c.b16 %v260, %v259
      %v286 = vpack.c.b16 %v262, %v261
      %v287 = vpack.c.b16 %v264, %v263
      %v288 = vpack.c.b16 %v266, %v265
      %v289 = vpack.c.b16 %v268, %v267
      %v290 = vpack.c.b16 %v270, %v269
      %v291 = vpack.c.b16 %v272, %v271
      %v292 = vpack.c.b16 %v274, %v273
      %v293 = vpack.c.b16 %v276, %v275
      %v294 = vpack.c.b16 %v278, %v277
      %vm295 = vcmask 31744
      %v297 = vsel %vm295, %v279, 0
      %v300 = vsel %vm295, %v280, 0
      %v303 = vsel %vm295, %v281, 0
      %v306 = vsel %vm295, %v282, 0
      %v309 = vsel %vm295, %v283, 0
      %v312 = vsel %vm295, %v284, 0
      %v315 = vsel %vm295, %v285, 0
      %v318 = vsel %vm295, %v286, 0
      %v321 = vsel %vm295, %v287, 0
      %v324 = vsel %vm295, %v288, 0
      %v327 = vsel %vm295, %v289, 0
      %v330 = vsel %vm295, %v290, 0
      %v333 = vsel %vm295, %v291, 0
      %v336 = vsel %vm295, %v292, 0
      %v339 = vsel %vm295, %v293, 0
      %v342 = vsel %vm295, %v294, 0
      %vm344 = vcmask 1041408
      %v346 = vsel %vm344, %v207, 0
      %348 = vmatprep.subr.bf16.mxu0 0
      %349 = vmatpush1.bf16.msra.mxu0 0
      %350 = vmatprep.subr.bf16.mxu0 0
      %351 = vmatpush1.bf16.msra.mxu0 0
      %352 = vmatprep.subr.bf16.mxu0 0
      %353 = vmatpush1.bf16.msra.mxu0 0
      %354 = vmatprep.subr.bf16.mxu0 0
      %355 = vmatpush1.bf16.msra.mxu0 0
      %356 = vmatprep.subr.bf16.mxu0 0
      %357 = vmatpush1.bf16.msra.mxu0 0
      %358 = vmatprep.subr.bf16.mxu0 0
      %359 = vmatpush1.bf16.msra.mxu0 0
      %360 = vmatprep.subr.bf16.mxu0 0
      %361 = vmatpush1.bf16.msra.mxu0 0
      %362 = vmatprep.subr.bf16.mxu0 0
      %363 = vmatpush1.bf16.msra.mxu0 %v346
      %364 = vmatprep.subr.bf16.mxu0 0
      %365 = vmatpush2.bf16.msra.mxu0 0
      %366 = vmatprep.subr.bf16.mxu0 0
      %367 = vmatpush2.bf16.msra.mxu0 0
      %368 = vmatprep.subr.bf16.mxu0 0
      %369 = vmatpush2.bf16.msra.mxu0 0
      %370 = vmatprep.subr.bf16.mxu0 0
      %371 = vmatpush2.bf16.msra.mxu0 0
      %372 = vmatprep.subr.bf16.mxu0 0
      %373 = vmatpush2.bf16.msra.mxu0 0
      %374 = vmatprep.subr.bf16.mxu0 0
      %375 = vmatpush2.bf16.msra.mxu0 0
      %376 = vmatprep.subr.bf16.mxu0 0
      %377 = vmatpush2.bf16.msra.mxu0 0
      %378 = vmatprep.subr.bf16.mxu0 0
      %379 = vmatpush2.bf16.msra.mxu0 0
      %380 = vmatprep.mubr.bf16.mxu0 0
      %381 = vmatmul.mubr.bf16.gmra.mxu0 %v297
      %v382 = vpop.f32.mrf.mxu0
      %v383 = vadd.f32 %v213, %v382
      %v384 = vpop.f32.mrf.mxu0
      %v385 = vpop.f32.mrf.mxu0
      %v386 = vadd.f32 %v213, %v385
      %v387 = vpop.f32.mrf.mxu0
      %388 = vmatprep.mubr.bf16.mxu0 0
      %389 = vmatmul.mubr.bf16.gmra.mxu0 %v300
      %v390 = vpop.f32.mrf.mxu0
      %v391 = vadd.f32 %v213, %v390
      %v392 = vpop.f32.mrf.mxu0
      %v393 = vpop.f32.mrf.mxu0
      %v394 = vadd.f32 %v213, %v393
      %v395 = vpop.f32.mrf.mxu0
      %396 = vmatprep.mubr.bf16.mxu0 0
      %397 = vmatmul.mubr.bf16.gmra.mxu0 %v303
      %v398 = vpop.f32.mrf.mxu0
      %v399 = vadd.f32 %v213, %v398
      %v400 = vpop.f32.mrf.mxu0
      %v401 = vpop.f32.mrf.mxu0
      %v402 = vadd.f32 %v213, %v401
      %v403 = vpop.f32.mrf.mxu0
      %404 = vmatprep.mubr.bf16.mxu0 0
      %405 = vmatmul.mubr.bf16.gmra.mxu0 %v306
      %v406 = vpop.f32.mrf.mxu0
      %v407 = vadd.f32 %v213, %v406
      %v408 = vpop.f32.mrf.mxu0
      %v409 = vpop.f32.mrf.mxu0
      %v410 = vadd.f32 %v213, %v409
      %v411 = vpop.f32.mrf.mxu0
      %412 = vmatprep.mubr.bf16.mxu0 0
      %413 = vmatmul.mubr.bf16.gmra.mxu0 %v309
      %v414 = vpop.f32.mrf.mxu0
      %v415 = vadd.f32 %v213, %v414
      %v416 = vpop.f32.mrf.mxu0
      %v417 = vpop.f32.mrf.mxu0
      %v418 = vadd.f32 %v213, %v417
      %v419 = vpop.f32.mrf.mxu0
      %420 = vmatprep.mubr.bf16.mxu0 0
      %421 = vmatmul.mubr.bf16.gmra.mxu0 %v312
      %v422 = vpop.f32.mrf.mxu0
      %v423 = vadd.f32 %v213, %v422
      %v424 = vpop.f32.mrf.mxu0
      %v425 = vpop.f32.mrf.mxu0
      %v426 = vadd.f32 %v213, %v425
      %v427 = vpop.f32.mrf.mxu0
      %428 = vmatprep.mubr.bf16.mxu0 0
      %429 = vmatmul.mubr.bf16.gmra.mxu0 %v315
      %v430 = vpop.f32.mrf.mxu0
      %v431 = vadd.f32 %v213, %v430
      %v432 = vpop.f32.mrf.mxu0
      %v433 = vpop.f32.mrf.mxu0
      %v434 = vadd.f32 %v213, %v433
      %v435 = vpop.f32.mrf.mxu0
      %436 = vmatprep.mubr.bf16.mxu0 0
      %437 = vmatmul.mubr.bf16.gmra.mxu0 %v318
      %v438 = vpop.f32.mrf.mxu0
      %v439 = vadd.f32 %v213, %v438
      %v440 = vpop.f32.mrf.mxu0
      %v441 = vpop.f32.mrf.mxu0
      %v442 = vadd.f32 %v213, %v441
      %v443 = vpop.f32.mrf.mxu0
      %444 = vmatprep.mubr.bf16.mxu0 0
      %445 = vmatmul.mubr.bf16.gmra.mxu0 %v321
      %v446 = vpop.f32.mrf.mxu0
      %v447 = vadd.f32 %v213, %v446
      %v448 = vpop.f32.mrf.mxu0
      %v449 = vpop.f32.mrf.mxu0
      %v450 = vadd.f32 %v213, %v449
      %v451 = vpop.f32.mrf.mxu0
      %452 = vmatprep.mubr.bf16.mxu0 0
      %453 = vmatmul.mubr.bf16.gmra.mxu0 %v324
      %v454 = vpop.f32.mrf.mxu0
      %v455 = vadd.f32 %v213, %v454
      %v456 = vpop.f32.mrf.mxu0
      %v457 = vpop.f32.mrf.mxu0
      %v458 = vadd.f32 %v213, %v457
      %v459 = vpop.f32.mrf.mxu0
      %460 = vmatprep.mubr.bf16.mxu0 0
      %461 = vmatmul.mubr.bf16.gmra.mxu0 %v327
      %v462 = vpop.f32.mrf.mxu0
      %v463 = vadd.f32 %v213, %v462
      %v464 = vpop.f32.mrf.mxu0
      %v465 = vpop.f32.mrf.mxu0
      %v466 = vadd.f32 %v213, %v465
      %v467 = vpop.f32.mrf.mxu0
      %468 = vmatprep.mubr.bf16.mxu0 0
      %469 = vmatmul.mubr.bf16.gmra.mxu0 %v330
      %v470 = vpop.f32.mrf.mxu0
      %v471 = vadd.f32 %v213, %v470
      %v472 = vpop.f32.mrf.mxu0
      %v473 = vpop.f32.mrf.mxu0
      %v474 = vadd.f32 %v213, %v473
      %v475 = vpop.f32.mrf.mxu0
      %476 = vmatprep.mubr.bf16.mxu0 0
      %477 = vmatmul.mubr.bf16.gmra.mxu0 %v333
      %v478 = vpop.f32.mrf.mxu0
      %v479 = vadd.f32 %v213, %v478
      %v480 = vpop.f32.mrf.mxu0
      %v481 = vpop.f32.mrf.mxu0
      %v482 = vadd.f32 %v213, %v481
      %v483 = vpop.f32.mrf.mxu0
      %484 = vmatprep.mubr.bf16.mxu0 0
      %485 = vmatmul.mubr.bf16.gmra.mxu0 %v336
      %v486 = vpop.f32.mrf.mxu0
      %v487 = vadd.f32 %v213, %v486
      %v488 = vpop.f32.mrf.mxu0
      %v489 = vpop.f32.mrf.mxu0
      %v490 = vadd.f32 %v213, %v489
      %v491 = vpop.f32.mrf.mxu0
      %492 = vmatprep.mubr.bf16.mxu0 0
      %493 = vmatmul.mubr.bf16.gmra.mxu0 %v339
      %v494 = vpop.f32.mrf.mxu0
      %v495 = vadd.f32 %v213, %v494
      %v496 = vpop.f32.mrf.mxu0
      %v497 = vpop.f32.mrf.mxu0
      %v498 = vadd.f32 %v213, %v497
      %v499 = vpop.f32.mrf.mxu0
      %500 = vmatprep.mubr.bf16.mxu0 0
      %501 = vmatmul.mubr.bf16.gmra.mxu0 %v342
      %v502 = vpop.f32.mrf.mxu0
      %v503 = vadd.f32 %v213, %v502
      %v504 = vpop.f32.mrf.mxu0
      %v505 = vpop.f32.mrf.mxu0
      %v506 = vadd.f32 %v213, %v505
      %v507 = vpop.f32.mrf.mxu0
      %508 = vdwg.mxu0
      %v509 = vxor.u32 %v383, 2147483648
      %v510 = vxor.u32 %v386, 2147483648
      %v511 = vxor.u32 %v391, 2147483648
      %v512 = vxor.u32 %v394, 2147483648
      %v513 = vxor.u32 %v399, 2147483648
      %v514 = vxor.u32 %v402, 2147483648
      %v515 = vxor.u32 %v407, 2147483648
      %v516 = vxor.u32 %v410, 2147483648
      %v517 = vxor.u32 %v415, 2147483648
      %v518 = vxor.u32 %v418, 2147483648
      %v519 = vxor.u32 %v423, 2147483648
      %v520 = vxor.u32 %v426, 2147483648
      %v521 = vxor.u32 %v431, 2147483648
      %v522 = vxor.u32 %v434, 2147483648
      %v523 = vxor.u32 %v439, 2147483648
      %v524 = vxor.u32 %v442, 2147483648
      %v525 = vxor.u32 %v447, 2147483648
      %v526 = vxor.u32 %v450, 2147483648
      %v527 = vxor.u32 %v455, 2147483648
      %v528 = vxor.u32 %v458, 2147483648
      %v529 = vxor.u32 %v463, 2147483648
      %v530 = vxor.u32 %v466, 2147483648
      %v531 = vxor.u32 %v471, 2147483648
      %v532 = vxor.u32 %v474, 2147483648
      %v533 = vxor.u32 %v479, 2147483648
      %v534 = vxor.u32 %v482, 2147483648
      %v535 = vxor.u32 %v487, 2147483648
      %v536 = vxor.u32 %v490, 2147483648
      %v537 = vxor.u32 %v495, 2147483648
      %v538 = vxor.u32 %v498, 2147483648
      %v539 = vxor.u32 %v503, 2147483648
      %v540 = vxor.u32 %v506, 2147483648
      %v541 = vmul.f32 %v509, 1.442695
      %v542 = vpow.pop %v541
      %v543 = vmul.f32 %v510, 1.442695
      %v544 = vpow.pop %v543
      %v545 = vmul.f32 %v511, 1.442695
      %v546 = vpow.pop %v545
      %v547 = vmul.f32 %v512, 1.442695
      %v548 = vpow.pop %v547
      %v549 = vmul.f32 %v513, 1.442695
      %v550 = vpow.pop %v549
      %v551 = vmul.f32 %v514, 1.442695
      %v552 = vpow.pop %v551
      %v553 = vmul.f32 %v515, 1.442695
      %v554 = vpow.pop %v553
      %v555 = vmul.f32 %v516, 1.442695
      %v556 = vpow.pop %v555
      %v557 = vmul.f32 %v517, 1.442695
      %v558 = vpow.pop %v557
      %v559 = vmul.f32 %v518, 1.442695
      %v560 = vpow.pop %v559
      %v561 = vmul.f32 %v519, 1.442695
      %v562 = vpow.pop %v561
      %v563 = vmul.f32 %v520, 1.442695
      %v564 = vpow.pop %v563
      %v565 = vmul.f32 %v521, 1.442695
      %v566 = vpow.pop %v565
      %v567 = vmul.f32 %v522, 1.442695
      %v568 = vpow.pop %v567
      %v569 = vmul.f32 %v523, 1.442695
      %v570 = vpow.pop %v569
      %v571 = vmul.f32 %v524, 1.442695
      %v572 = vpow.pop %v571
      %v573 = vmul.f32 %v525, 1.442695
      %v574 = vpow.pop %v573
      %v575 = vmul.f32 %v526, 1.442695
      %v576 = vpow.pop %v575
      %v577 = vmul.f32 %v527, 1.442695
      %v578 = vpow.pop %v577
      %v579 = vmul.f32 %v528, 1.442695
      %v580 = vpow.pop %v579
      %v581 = vmul.f32 %v529, 1.442695
      %v582 = vpow.pop %v581
      %v583 = vmul.f32 %v530, 1.442695
      %v584 = vpow.pop %v583
      %v585 = vmul.f32 %v531, 1.442695
      %v586 = vpow.pop %v585
      %v587 = vmul.f32 %v532, 1.442695
      %v588 = vpow.pop %v587
      %v589 = vmul.f32 %v533, 1.442695
      %v590 = vpow.pop %v589
      %v591 = vmul.f32 %v534, 1.442695
      %v592 = vpow.pop %v591
      %v593 = vmul.f32 %v535, 1.442695
      %v594 = vpow.pop %v593
      %v595 = vmul.f32 %v536, 1.442695
      %v596 = vpow.pop %v595
      %v597 = vmul.f32 %v537, 1.442695
      %v598 = vpow.pop %v597
      %v599 = vmul.f32 %v538, 1.442695
      %v600 = vpow.pop %v599
      %v601 = vmul.f32 %v539, 1.442695
      %v602 = vpow.pop %v601
      %v603 = vmul.f32 %v540, 1.442695
      %v604 = vpow.pop %v603
      %v605 = vadd.f32 %v542, 1.0
      %v606 = vadd.f32 %v544, 1.0
      %v607 = vadd.f32 %v546, 1.0
      %v608 = vadd.f32 %v548, 1.0
      %v609 = vadd.f32 %v550, 1.0
      %v610 = vadd.f32 %v552, 1.0
      %v611 = vadd.f32 %v554, 1.0
      %v612 = vadd.f32 %v556, 1.0
      %v613 = vadd.f32 %v558, 1.0
      %v614 = vadd.f32 %v560, 1.0
      %v615 = vadd.f32 %v562, 1.0
      %v616 = vadd.f32 %v564, 1.0
      %v617 = vadd.f32 %v566, 1.0
      %v618 = vadd.f32 %v568, 1.0
      %v619 = vadd.f32 %v570, 1.0
      %v620 = vadd.f32 %v572, 1.0
      %v621 = vadd.f32 %v574, 1.0
      %v622 = vadd.f32 %v576, 1.0
      %v623 = vadd.f32 %v578, 1.0
      %v624 = vadd.f32 %v580, 1.0
      %v625 = vadd.f32 %v582, 1.0
      %v626 = vadd.f32 %v584, 1.0
      %v627 = vadd.f32 %v586, 1.0
      %v628 = vadd.f32 %v588, 1.0
      %v629 = vadd.f32 %v590, 1.0
      %v630 = vadd.f32 %v592, 1.0
      %v631 = vadd.f32 %v594, 1.0
      %v632 = vadd.f32 %v596, 1.0
      %v633 = vadd.f32 %v598, 1.0
      %v634 = vadd.f32 %v600, 1.0
      %v635 = vadd.f32 %v602, 1.0
      %v636 = vadd.f32 %v604, 1.0
      %v637 = vrcp.pop %v605
      %v638 = vmul.f32 1.0, %v637
      %v639 = vrcp.pop %v606
      %v640 = vmul.f32 1.0, %v639
      %v641 = vrcp.pop %v607
      %v642 = vmul.f32 1.0, %v641
      %v643 = vrcp.pop %v608
      %v644 = vmul.f32 1.0, %v643
      %v645 = vrcp.pop %v609
      %v646 = vmul.f32 1.0, %v645
      %v647 = vrcp.pop %v610
      %v648 = vmul.f32 1.0, %v647
      %v649 = vrcp.pop %v611
      %v650 = vmul.f32 1.0, %v649
      %v651 = vrcp.pop %v612
      %v652 = vmul.f32 1.0, %v651
      %v653 = vrcp.pop %v613
      %v654 = vmul.f32 1.0, %v653
      %v655 = vrcp.pop %v614
      %v656 = vmul.f32 1.0, %v655
      %v657 = vrcp.pop %v615
      %v658 = vmul.f32 1.0, %v657
      %v659 = vrcp.pop %v616
      %v660 = vmul.f32 1.0, %v659
      %v661 = vrcp.pop %v617
      %v662 = vmul.f32 1.0, %v661
      %v663 = vrcp.pop %v618
      %v664 = vmul.f32 1.0, %v663
      %v665 = vrcp.pop %v619
      %v666 = vmul.f32 1.0, %v665
      %v667 = vrcp.pop %v620
      %v668 = vmul.f32 1.0, %v667
      %v669 = vrcp.pop %v621
      %v670 = vmul.f32 1.0, %v669
      %v671 = vrcp.pop %v622
      %v672 = vmul.f32 1.0, %v671
      %v673 = vrcp.pop %v623
      %v674 = vmul.f32 1.0, %v673
      %v675 = vrcp.pop %v624
      %v676 = vmul.f32 1.0, %v675
      %v677 = vrcp.pop %v625
      %v678 = vmul.f32 1.0, %v677
      %v679 = vrcp.pop %v626
      %v680 = vmul.f32 1.0, %v679
      %v681 = vrcp.pop %v627
      %v682 = vmul.f32 1.0, %v681
      %v683 = vrcp.pop %v628
      %v684 = vmul.f32 1.0, %v683
      %v685 = vrcp.pop %v629
      %v686 = vmul.f32 1.0, %v685
      %v687 = vrcp.pop %v630
      %v688 = vmul.f32 1.0, %v687
      %v689 = vrcp.pop %v631
      %v690 = vmul.f32 1.0, %v689
      %v691 = vrcp.pop %v632
      %v692 = vmul.f32 1.0, %v691
      %v693 = vrcp.pop %v633
      %v694 = vmul.f32 1.0, %v693
      %v695 = vrcp.pop %v634
      %v696 = vmul.f32 1.0, %v695
      %v697 = vrcp.pop %v635
      %v698 = vmul.f32 1.0, %v697
      %v699 = vrcp.pop %v636
      %v700 = vmul.f32 1.0, %v699
      %v701 = vmul.f32 %v383, %v638
      %v702 = vmul.f32 %v386, %v640
      %v703 = vmul.f32 %v391, %v642
      %v704 = vmul.f32 %v394, %v644
      %v705 = vmul.f32 %v399, %v646
      %v706 = vmul.f32 %v402, %v648
      %v707 = vmul.f32 %v407, %v650
      %v708 = vmul.f32 %v410, %v652
      %v709 = vmul.f32 %v415, %v654
      %v710 = vmul.f32 %v418, %v656
      %v711 = vmul.f32 %v423, %v658
      %v712 = vmul.f32 %v426, %v660
      %v713 = vmul.f32 %v431, %v662
      %v714 = vmul.f32 %v434, %v664
      %v715 = vmul.f32 %v439, %v666
      %v716 = vmul.f32 %v442, %v668
      %v717 = vmul.f32 %v447, %v670
      %v718 = vmul.f32 %v450, %v672
      %v719 = vmul.f32 %v455, %v674
      %v720 = vmul.f32 %v458, %v676
      %v721 = vmul.f32 %v463, %v678
      %v722 = vmul.f32 %v466, %v680
      %v723 = vmul.f32 %v471, %v682
      %v724 = vmul.f32 %v474, %v684
      %v725 = vmul.f32 %v479, %v686
      %v726 = vmul.f32 %v482, %v688
      %v727 = vmul.f32 %v487, %v690
      %v728 = vmul.f32 %v490, %v692
      %v729 = vmul.f32 %v495, %v694
      %v730 = vmul.f32 %v498, %v696
      %v731 = vmul.f32 %v503, %v698
      %v732 = vmul.f32 %v506, %v700
      %v733 = vpack.c.bf16 %v702, %v701
      %v734 = vpack.c.bf16 %v704, %v703
      %v735 = vpack.c.bf16 %v706, %v705
      %v736 = vpack.c.bf16 %v708, %v707
      %v737 = vpack.c.bf16 %v710, %v709
      %v738 = vpack.c.bf16 %v712, %v711
      %v739 = vpack.c.bf16 %v714, %v713
      %v740 = vpack.c.bf16 %v716, %v715
      %v741 = vpack.c.bf16 %v718, %v717
      %v742 = vpack.c.bf16 %v720, %v719
      %v743 = vpack.c.bf16 %v722, %v721
      %v744 = vpack.c.bf16 %v724, %v723
      %v745 = vpack.c.bf16 %v726, %v725
      %v746 = vpack.c.bf16 %v728, %v727
      %v747 = vpack.c.bf16 %v730, %v729
      %v748 = vpack.c.bf16 %v732, %v731
      %v765 = vunpack.c.l.b16 %v733
      %v766 = vunpack.c.h.b16 %v733
      %v767 = vunpack.c.l.b16 %v734
      %v768 = vunpack.c.h.b16 %v734
      %v769 = vunpack.c.l.b16 %v735
      %v770 = vunpack.c.h.b16 %v735
      %v771 = vunpack.c.l.b16 %v736
      %v772 = vunpack.c.h.b16 %v736
      %v773 = vunpack.c.l.b16 %v737
      %v774 = vunpack.c.h.b16 %v737
      %v775 = vunpack.c.l.b16 %v738
      %v776 = vunpack.c.h.b16 %v738
      %v777 = vunpack.c.l.b16 %v739
      %v778 = vunpack.c.h.b16 %v739
      %v779 = vunpack.c.l.b16 %v740
      %v780 = vunpack.c.h.b16 %v740
      %v781 = vunpack.c.l.b16 %v741
      %v782 = vunpack.c.h.b16 %v741
      %v783 = vunpack.c.l.b16 %v742
      %v784 = vunpack.c.h.b16 %v742
      %v785 = vunpack.c.l.b16 %v743
      %v786 = vunpack.c.h.b16 %v743
      %v787 = vunpack.c.l.b16 %v744
      %v788 = vunpack.c.h.b16 %v744
      %v789 = vunpack.c.l.b16 %v745
      %v790 = vunpack.c.h.b16 %v745
      %v791 = vunpack.c.l.b16 %v746
      %v792 = vunpack.c.h.b16 %v746
      %v793 = vunpack.c.l.b16 %v747
      %v794 = vunpack.c.h.b16 %v747
      %v795 = vunpack.c.l.b16 %v748
      %v796 = vunpack.c.h.b16 %v748
      %v797 = vpack.c.b16 %v765, %v765
      %v798 = vpack.c.b16 %v766, %v766
      %v799 = vpack.c.b16 %v767, %v767
      %v800 = vpack.c.b16 %v768, %v768
      %v801 = vpack.c.b16 %v769, %v769
      %v802 = vpack.c.b16 %v770, %v770
      %v803 = vpack.c.b16 %v771, %v771
      %v804 = vpack.c.b16 %v772, %v772
      %v805 = vpack.c.b16 %v773, %v773
      %v806 = vpack.c.b16 %v774, %v774
      %v807 = vpack.c.b16 %v775, %v775
      %v808 = vpack.c.b16 %v776, %v776
      %v809 = vpack.c.b16 %v777, %v777
      %v810 = vpack.c.b16 %v778, %v778
      %v811 = vpack.c.b16 %v779, %v779
      %v812 = vpack.c.b16 %v780, %v780
      %v813 = vpack.c.b16 %v781, %v781
      %v814 = vpack.c.b16 %v782, %v782
      %v815 = vpack.c.b16 %v783, %v783
      %v816 = vpack.c.b16 %v784, %v784
      %v817 = vpack.c.b16 %v785, %v785
      %v818 = vpack.c.b16 %v786, %v786
      %v819 = vpack.c.b16 %v787, %v787
      %v820 = vpack.c.b16 %v788, %v788
      %v821 = vpack.c.b16 %v789, %v789
      %v822 = vpack.c.b16 %v790, %v790
      %v823 = vpack.c.b16 %v791, %v791
      %v824 = vpack.c.b16 %v792, %v792
      %v825 = vpack.c.b16 %v793, %v793
      %v826 = vpack.c.b16 %v794, %v794
      %v827 = vpack.c.b16 %v795, %v795
      %v828 = vpack.c.b16 %v796, %v796
      %vm861 = vcmask 27648
      %862 = vst.msk [vmem:[%s172] sm:$0xf] %vm861, %v797
      %863 = vst.msk [vmem:[%s172 + $0x4] sm:$0xf] %vm861, %v798
      %864 = vst.msk [vmem:[%s172 + $0x8] sm:$0xf] %vm861, %v799
      %865 = vst.msk [vmem:[%s172 + $0xc] sm:$0xf] %vm861, %v800
      %866 = vst.msk [vmem:[%s172 + $0x10] sm:$0xf] %vm861, %v801
      %867 = vst.msk [vmem:[%s172 + $0x14] sm:$0xf] %vm861, %v802
      %868 = vst.msk [vmem:[%s172 + $0x18] sm:$0xf] %vm861, %v803
      %869 = vst.msk [vmem:[%s172 + $0x1c] sm:$0xf] %vm861, %v804
      %870 = vst.msk [vmem:[%s172 + $0x20] sm:$0xf] %vm861, %v805
      %871 = vst.msk [vmem:[%s172 + $0x24] sm:$0xf] %vm861, %v806
      %872 = vst.msk [vmem:[%s172 + $0x28] sm:$0xf] %vm861, %v807
      %873 = vst.msk [vmem:[%s172 + $0x2c] sm:$0xf] %vm861, %v808
      %874 = vst.msk [vmem:[%s172 + $0x30] sm:$0xf] %vm861, %v809
      %875 = vst.msk [vmem:[%s172 + $0x34] sm:$0xf] %vm861, %v810
      %876 = vst.msk [vmem:[%s172 + $0x38] sm:$0xf] %vm861, %v811
      %877 = vst.msk [vmem:[%s172 + $0x3c] sm:$0xf] %vm861, %v812
      %878 = vst.msk [vmem:[%s172 + $0x40] sm:$0xf] %vm861, %v813
      %879 = vst.msk [vmem:[%s172 + $0x44] sm:$0xf] %vm861, %v814
      %880 = vst.msk [vmem:[%s172 + $0x48] sm:$0xf] %vm861, %v815
      %881 = vst.msk [vmem:[%s172 + $0x4c] sm:$0xf] %vm861, %v816
      %882 = vst.msk [vmem:[%s172 + $0x50] sm:$0xf] %vm861, %v817
      %883 = vst.msk [vmem:[%s172 + $0x54] sm:$0xf] %vm861, %v818
      %884 = vst.msk [vmem:[%s172 + $0x58] sm:$0xf] %vm861, %v819
      %885 = vst.msk [vmem:[%s172 + $0x5c] sm:$0xf] %vm861, %v820
      %886 = vst.msk [vmem:[%s172 + $0x60] sm:$0xf] %vm861, %v821
      %887 = vst.msk [vmem:[%s172 + $0x64] sm:$0xf] %vm861, %v822
      %888 = vst.msk [vmem:[%s172 + $0x68] sm:$0xf] %vm861, %v823
      %889 = vst.msk [vmem:[%s172 + $0x6c] sm:$0xf] %vm861, %v824
      %890 = vst.msk [vmem:[%s172 + $0x70] sm:$0xf] %vm861, %v825
      %891 = vst.msk [vmem:[%s172 + $0x74] sm:$0xf] %vm861, %v826
      %892 = vst.msk [vmem:[%s172 + $0x78] sm:$0xf] %vm861, %v827
      %893 = vst.msk [vmem:[%s172 + $0x7c] sm:$0xf] %vm861, %v828
      %s894 = smul.u32 32, %s14
      %p895 = scmp.lt.s32.totalorder %s894, 63
      %s896 = scalar_select %p895, %s894, 63
      %s897 = smul.addr %s896, 4
      %s898 = scalar_lea.vmem %s3, %s897
      // Predicated region
      $region33: #{tpu_custom_call.1} parent=31 // pred_check
        %p899 = pneg %p100
      $region34: #{tpu_custom_call.1} parent=31 // pred_check_branch
        %901 = sbr.rel (%p899) target = $region36
      $region35: #{tpu_custom_call.1} parent=31 // pred_region
        %s902 = smul.u32 32, %s14
      $region36: #{tpu_custom_call.1} parent=31 // pred_fallthru
        _
    $region32: #{tpu_custom_call.1} parent=5 // pred_fallthru
      _
    %p903 = scmp.le.s32.totalorder 2, %s9
    // Predicated region
    $region37: #{tpu_custom_call.1} parent=5 // pred_check
      %p904 = pneg %p903
    $region38: #{tpu_custom_call.1} parent=5 // pred_check_branch
      %906 = sbr.rel (%p904) target = $region40
    $region39: #{tpu_custom_call.1} parent=5 // pred_region
      %s907 = ssub.s32 %s9, 2
      // Predicated region
      $region41: #{tpu_custom_call.1} parent=39 // pred_check
        %p908 = pneg %p106
      $region42: #{tpu_custom_call.1} parent=39 // pred_check_branch
        %910 = sbr.rel (%p908) target = $region44
      $region43: #{tpu_custom_call.1} parent=39 // pred_region
        %s911 = smul.u32 32, %s15
        %p912 = scmp.lt.s32.totalorder %s911, 63
        %s913 = scalar_select %p912, %s911, 63
        %s914 = smul.addr %s913, 4
        %s915 = scalar_lea.vmem %s3, %s914
      $region44: #{tpu_custom_call.1} parent=39 // pred_fallthru
        _
    $region40: #{tpu_custom_call.1} parent=5 // pred_fallthru
      _
  $region6: #{tpu_custom_call.1} parent=0 // loop_footer
    %s13 = sadd.s32 1, %s9
  $region7: #{tpu_custom_call.1} parent=0 // loop_footer_branch
    %8 = sbr.rel target = $region3
  $region8: #{tpu_custom_call.1} parent=0 // loop_exit
    _

</llo_original>
